<compile_context>
chip_gen: v7x
topology: tpu7x:2x2x1
jax: 0.10.0
libtpu: 0.0.40
codegen_flags: <defaults>
</compile_context>

<pallas_src>
import functools
import math

import jax
import jax.numpy as jnp
from jax.experimental import pallas as pl
from jax.experimental.pallas import tpu as pltpu

LPAD = 128               # lane-padded classifier width
NEG_BIG = -1.0e9         # bias for padded classifier lanes


# ----------------------------------------------------------------------------
# small helpers
# ----------------------------------------------------------------------------
def _ln(x, g, b, eps=1e-5):
    mu = jnp.mean(x, axis=-1, keepdims=True)
    var = jnp.mean((x - mu) ** 2, axis=-1, keepdims=True)
    return (x - mu) * jax.lax.rsqrt(var + eps) * g + b


def _gelu(x):
    # TODO(synk): RoBERTa uses exact erf-GELU; tanh approximation used here.
    return 0.5 * x * (1.0 + jnp.tanh(0.7978845608028654 * (x + 0.044715 * x * x * x)))


def _pick_tile_m(n_tokens):
    """Largest token tile from {512,256,128} that divides n_tokens, else full."""
    for t in (512, 256, 128):
        if n_tokens % t == 0:
            return t
    return n_tokens


def _bf16(x):
    return x.astype(jnp.bfloat16)


# ----------------------------------------------------------------------------
# Kernel 1: token-tiled LayerNorm (embedding LN)
# ----------------------------------------------------------------------------
def layernorm_kernel(x_ref, g_ref, b_ref, o_ref):
    o_ref[...] = _ln(x_ref[...], g_ref[...], b_ref[...])


def layernorm_pallas(x2d, gamma, beta):
    n, h = x2d.shape
    t = _pick_tile_m(n)
    return pl.pallas_call(
        layernorm_kernel,
        out_shape=jax.ShapeDtypeStruct((n, h), jnp.float32),
        grid=(n // t,),
        in_specs=[
            pl.BlockSpec((t, h), lambda i: (i, 0)),
            pl.BlockSpec((1, h), lambda i: (0, 0)),
            pl.BlockSpec((1, h), lambda i: (0, 0)),
        ],
        out_specs=pl.BlockSpec((t, h), lambda i: (i, 0)),
        compiler_params=pltpu.CompilerParams(dimension_semantics=("parallel",)),
    )(x2d, gamma.reshape(1, -1), beta.reshape(1, -1))


# ----------------------------------------------------------------------------
# Kernel 2a: self-attention block (fused QKV, single Wo, residual + LN1)
#            grid over batch; weights stay VMEM-resident (constant index_map)
# ----------------------------------------------------------------------------
def attn_kernel(h_ref, bias_ref, wqkv_ref, bqkv_ref, wo_ref, bo_ref,
                g_ref, b_ref, o_ref, *, num_heads):
    h = h_ref[0]                                   # (S, H) f32
    S, H = h.shape
    hd = H // num_heads
    bias = bias_ref[0]                             # (1, S) additive mask bias

    # fused QKV projection: one (S,H) @ (H,3H) bf16 matmul, f32 accumulate
    qkv = jnp.dot(_bf16(h), wqkv_ref[...],
                  preferred_element_type=jnp.float32) + bqkv_ref[...]   # (S, 3H)

    scale = 1.0 / math.sqrt(hd)
    ctx_parts = []
    for hh in range(num_heads):                    # static head loop
        qh = qkv[:, hh * hd:(hh + 1) * hd]
        kh = qkv[:, H + hh * hd:H + (hh + 1) * hd]
        vh = qkv[:, 2 * H + hh * hd:2 * H + (hh + 1) * hd]
        s = jax.lax.dot_general(_bf16(qh), _bf16(kh),
                                (((1,), (1,)), ((), ())),
                                preferred_element_type=jnp.float32) * scale
        s = s + bias                               # broadcast over query dim
        s = s - jnp.max(s, axis=-1, keepdims=True)
        p = jnp.exp(s)
        p = p * pl.reciprocal(jnp.sum(p, axis=-1, keepdims=True), approx=True)
        ctx_parts.append(jnp.dot(_bf16(p), _bf16(vh),
                                 preferred_element_type=jnp.float32))   # (S, hd)
    ctx = jnp.concatenate(ctx_parts, axis=1)       # (S, H)

    # single full-width output projection
    attn = jnp.dot(_bf16(ctx), wo_ref[...],
                   preferred_element_type=jnp.float32) + bo_ref[...]
    o_ref[0] = _ln(attn + h, g_ref[...], b_ref[...])


def attention_block(h, mask_bias, lp, num_heads):
    B, S, H = h.shape
    kernel = functools.partial(attn_kernel, num_heads=num_heads)
    const = lambda b: (0, 0)
    return pl.pallas_call(
        kernel,
        out_shape=jax.ShapeDtypeStruct((B, S, H), jnp.float32),
        grid=(B,),
        in_specs=[
            pl.BlockSpec((1, S, H), lambda b: (b, 0, 0)),
            pl.BlockSpec((1, 1, S), lambda b: (b, 0, 0)),
            pl.BlockSpec((H, 3 * H), const),        # wqkv (bf16), resident
            pl.BlockSpec((1, 3 * H), const),
            pl.BlockSpec((H, H), const),            # wo (bf16), resident
            pl.BlockSpec((1, H), const),
            pl.BlockSpec((1, H), const),
            pl.BlockSpec((1, H), const),
        ],
        out_specs=pl.BlockSpec((1, S, H), lambda b: (b, 0, 0)),
        compiler_params=pltpu.CompilerParams(
            dimension_semantics=("parallel",),
            vmem_limit_bytes=64 * 1024 * 1024),
    )(h, mask_bias, lp['wqkv'], lp['bqkv'], lp['wo'], lp['bo'],
      lp['ln1_g'], lp['ln1_b'])


# ----------------------------------------------------------------------------
# Kernel 2b: FFN block (GELU MLP + residual + LN2), token-tiled grid
# ----------------------------------------------------------------------------
def ffn_kernel(h_ref, w1_ref, b1_ref, w2_ref, b2_ref, g_ref, b_ref, o_ref):
    h1 = h_ref[...]                                # (T, H) f32
    x1 = jnp.dot(_bf16(h1), w1_ref[...],
                 preferred_element_type=jnp.float32) + b1_ref[...]
    x1 = _gelu(x1)
    x2 = jnp.dot(_bf16(x1), w2_ref[...],
                 preferred_element_type=jnp.float32) + b2_ref[...]
    o_ref[...] = _ln(x2 + h1, g_ref[...], b_ref[...])


def ffn_block(h2d, lp):
    N, H = h2d.shape
    I = lp['w1'].shape[1]
    t = _pick_tile_m(N)
    const = lambda i: (0, 0)
    return pl.pallas_call(
        ffn_kernel,
        out_shape=jax.ShapeDtypeStruct((N, H), jnp.float32),
        grid=(N // t,),
        in_specs=[
            pl.BlockSpec((t, H), lambda i: (i, 0)),
            pl.BlockSpec((H, I), const),            # w1 (bf16), resident
            pl.BlockSpec((1, I), const),
            pl.BlockSpec((I, H), const),            # w2 (bf16), resident
            pl.BlockSpec((1, H), const),
            pl.BlockSpec((1, H), const),
            pl.BlockSpec((1, H), const),
        ],
        out_specs=pl.BlockSpec((t, H), lambda i: (i, 0)),
        compiler_params=pltpu.CompilerParams(
            dimension_semantics=("parallel",),
            vmem_limit_bytes=64 * 1024 * 1024),
    )(h2d, lp['w1'], lp['b1'], lp['w2'], lp['b2'], lp['ln2_g'], lp['ln2_b'])


# ----------------------------------------------------------------------------
# Kernel 3: lane-dense classifier + argmax prediction + weighted CE loss
#           token-tiled grid, loss accumulated in SMEM scratch (P3 pattern)
# ----------------------------------------------------------------------------
def head_kernel(x_ref, wc_ref, bc_ref, labels_ref, cw_ref,
                emis_ref, pred_ref, loss_ref, num_sc, den_sc):
    i = pl.program_id(0)

    @pl.when(i == 0)
    def _():
        num_sc[0] = 0.0
        den_sc[0] = 0.0

    x = x_ref[...]                                 # (T, H) f32
    # lane-dense (T, 128) emissions slab; padded lanes carry NEG_BIG bias
    emis = jnp.dot(_bf16(x), wc_ref[...],
                   preferred_element_type=jnp.float32) + bc_ref[...]
    emis_ref[...] = emis

    # predictions = argmax(softmax(emissions)) == argmax(emissions)
    m = jnp.max(emis, axis=-1, keepdims=True)
    idx = jax.lax.broadcasted_iota(jnp.int32, emis.shape, 1)
    cand = jnp.where(emis == m, idx.astype(jnp.float32), float(LPAD))
    pred_ref[...] = jnp.min(cand, axis=-1, keepdims=True).astype(jnp.int32)

    # class-weighted cross-entropy, PyTorch 'mean' semantics:
    #   sum(w_y * nll) / sum(w_y)
    # TODO(synk): ignore_index=-100 tokens are not masked (none in this setup).
    labels = labels_ref[...]                       # (T, 1) int32
    onehot = (idx == labels).astype(jnp.float32)   # (T, LPAD)
    logz = jnp.log(jnp.sum(jnp.exp(emis - m), axis=-1, keepdims=True)) + m
    nll = -jnp.sum((emis - logz) * onehot, axis=-1)          # (T,)
    w_y = jnp.sum(cw_ref[...] * onehot, axis=-1)             # (T,)
    num_sc[0] = num_sc[0] + jnp.sum(w_y * nll)
    den_sc[0] = den_sc[0] + jnp.sum(w_y)

    @pl.when(i == pl.num_programs(0) - 1)
    def _():
        loss_ref[0, 0] = num_sc[0] / den_sc[0]


def classifier_head(x2d, wc_pad, bc_pad, labels2d, cw_pad):
    N, H = x2d.shape
    t = _pick_tile_m(N)
    const = lambda i: (0, 0)
    return pl.pallas_call(
        head_kernel,
        out_shape=(
            jax.ShapeDtypeStruct((N, LPAD), jnp.float32),    # padded emissions
            jax.ShapeDtypeStruct((N, 1), jnp.int32),         # predictions
            jax.ShapeDtypeStruct((1, 1), jnp.float32),       # loss
        ),
        grid=(N // t,),
        in_specs=[
            pl.BlockSpec((t, H), lambda i: (i, 0)),
            pl.BlockSpec((H, LPAD), const),
            pl.BlockSpec((1, LPAD), const),
            pl.BlockSpec((t, 1), lambda i: (i, 0)),
            pl.BlockSpec((1, LPAD), const),
        ],
        out_specs=(
            pl.BlockSpec((t, LPAD), lambda i: (i, 0)),
            pl.BlockSpec((t, 1), lambda i: (i, 0)),
            pl.BlockSpec((1, 1), lambda i: (0, 0),
                         memory_space=pltpu.MemorySpace.SMEM),
        ),
        scratch_shapes=[pltpu.SMEM((1,), jnp.float32),
                        pltpu.SMEM((1,), jnp.float32)],
        compiler_params=pltpu.CompilerParams(dimension_semantics=("arbitrary",)),
    )(x2d, wc_pad, bc_pad, labels2d, cw_pad)


# ----------------------------------------------------------------------------
# parameter init (deterministic, synthetic — not a checkpoint load)
# ----------------------------------------------------------------------------
def init_params(key, cfg, num_labels):
    H, I, V, P = cfg['hidden'], cfg['inter'], cfg['vocab'], cfg['max_pos']
    keys = iter(jax.random.split(key, 8 + 8 * cfg['layers']))

    def nrm(shape):
        return 0.02 * jax.random.normal(next(keys), shape, jnp.float32)

    p = dict(
        word_emb=nrm((V, H)),
        pos_emb=nrm((P, H)),
        type_emb=nrm((2, H)),
        emb_ln_g=jnp.ones((H,), jnp.float32),
        emb_ln_b=jnp.zeros((H,), jnp.float32),
        layers=[],
    )
    for _ in range(cfg['layers']):
        p['layers'].append(dict(
            wq=nrm((H, H)), bq=jnp.zeros((H,), jnp.float32),
            wk=nrm((H, H)), bk=jnp.zeros((H,), jnp.float32),
            wv=nrm((H, H)), bv=jnp.zeros((H,), jnp.float32),
            wo=nrm((H, H)), bo=jnp.zeros((H,), jnp.float32),
            ln1_g=jnp.ones((H,), jnp.float32), ln1_b=jnp.zeros((H,), jnp.float32),
            w1=nrm((H, I)), b1=jnp.zeros((I,), jnp.float32),
            w2=nrm((I, H)), b2=jnp.zeros((H,), jnp.float32),
            ln2_g=jnp.ones((H,), jnp.float32), ln2_b=jnp.zeros((H,), jnp.float32),
        ))
    # classifier: xavier_uniform weight, zero bias (as in the PyTorch module)
    limit = math.sqrt(6.0 / (H + num_labels))
    p['wc'] = jax.random.uniform(next(keys), (H, num_labels), jnp.float32,
                                 -limit, limit)
    p['bc'] = jnp.zeros((num_labels,), jnp.float32)
    return p


def prepare_model(p, num_labels):
    """Host-side prep: fuse QKV, cast matmul weights to bf16, lane-pad classifier."""
    H = p['word_emb'].shape[1]
    layers = []
    for lp in p['layers']:
        layers.append(dict(
            wqkv=_bf16(jnp.concatenate([lp['wq'], lp['wk'], lp['wv']], axis=1)),
            bqkv=jnp.concatenate([lp['bq'], lp['bk'], lp['bv']]).reshape(1, -1),
            wo=_bf16(lp['wo']), bo=lp['bo'].reshape(1, -1),
            ln1_g=lp['ln1_g'].reshape(1, -1), ln1_b=lp['ln1_b'].reshape(1, -1),
            w1=_bf16(lp['w1']), b1=lp['b1'].reshape(1, -1),
            w2=_bf16(lp['w2']), b2=lp['b2'].reshape(1, -1),
            ln2_g=lp['ln2_g'].reshape(1, -1), ln2_b=lp['ln2_b'].reshape(1, -1),
        ))
    assert num_labels == 4, "class weights hard-coded for 4 labels"
    wc_pad = _bf16(jnp.zeros((H, LPAD), jnp.float32).at[:, :num_labels].set(p['wc']))
    bc_pad = jnp.full((LPAD,), NEG_BIG, jnp.float32
                      ).at[:num_labels].set(p['bc']).reshape(1, -1)
    cw_pad = jnp.zeros((LPAD,), jnp.float32).at[:num_labels].set(
        jnp.array([1.7, 1.8, 0.5, 0.1], jnp.float32)).reshape(1, -1)
    return dict(
        word_emb=p['word_emb'], pos_emb=p['pos_emb'], type_emb=p['type_emb'],
        emb_ln_g=p['emb_ln_g'], emb_ln_b=p['emb_ln_b'],
        layers=layers, wc_pad=wc_pad, bc_pad=bc_pad, cw_pad=cw_pad,
        num_labels=num_labels,
    )


# ----------------------------------------------------------------------------
# full forward (matches CustomRobertaForTokenClassification.forward)
# ----------------------------------------------------------------------------
def forward(model, input_ids, attention_mask, labels, cfg):
    B, S = input_ids.shape
    H = cfg['hidden']
    L = model['num_labels']
    mask_f = attention_mask.astype(jnp.float32)

    # RoBERTa position ids: cumsum over non-pad tokens, offset by padding_idx=1
    position_ids = (jnp.cumsum(attention_mask, axis=1) * attention_mask + 1
                    ).astype(jnp.int32)
    emb = (jnp.take(model['word_emb'], input_ids, axis=0)
           + jnp.take(model['pos_emb'], position_ids, axis=0)
           + model['type_emb'][0][None, None, :])
    h2d = layernorm_pallas(emb.reshape(B * S, H),
                           model['emb_ln_g'], model['emb_ln_b'])
    # embedding dropout + sequence-output dropout(p=0.1): identity in eval mode

    mask_bias = ((1.0 - mask_f) * -10000.0)[:, None, :]      # (B, 1, S)
    h = h2d.reshape(B, S, H)
    for lp in model['layers']:
        h = attention_block(h, mask_bias, lp, cfg['heads'])  # MHA + LN1
        h = ffn_block(h.reshape(B * S, H), lp).reshape(B, S, H)  # FFN + LN2

    emis_pad, pred, loss = classifier_head(
        h.reshape(B * S, H), model['wc_pad'], model['bc_pad'],
        labels.reshape(B * S, 1).astype(jnp.int32), model['cw_pad'])

    emissions = emis_pad[:, :L].reshape(B, S, L)
    predictions = pred.reshape(B, S)

    # TODO(synk): self.crf is instantiated in __init__ but never used in
    # forward(), so it is intentionally not implemented.
    return {'loss': loss[0, 0], 'logits': predictions, 'emissions': emissions}


# ----------------------------------------------------------------------------
if __name__ == "__main__":
    cfg = dict(vocab=100, hidden=32, layers=2, heads=2, inter=64, max_pos=40)
    num_labels = 4
    B, S = 2, 8

    key = jax.random.PRNGKey(0)
    k_param, k_ids, k_lab = jax.random.split(key, 3)

    raw_params = init_params(k_param, cfg, num_labels)
    model = prepare_model(raw_params, num_labels)

    input_ids = jax.random.randint(k_ids, (B, S), 2, cfg['vocab'],
                                   dtype=jnp.int32)
    attention_mask = jnp.ones((B, S), jnp.int32).at[1, 6:].set(0)
    labels = jax.random.randint(k_lab, (B, S), 0, num_labels, dtype=jnp.int32)

    out = forward(model, input_ids, attention_mask, labels, cfg)
    jax.block_until_ready(out)

    assert out['logits'].shape == (B, S)
    assert out['emissions'].shape == (B, S, num_labels)
    assert jnp.isfinite(out['loss'])
    print("KERNEL_OK")
</pallas_src>

<mosaic_0001>
module attributes {stable_mosaic.version = 11 : i64} {
  func.func @layernorm_kernel(%arg0: i32, %arg1: memref<16x32xf32, #tpu.memory_space<vmem>>, %arg2: memref<1x32xf32, #tpu.memory_space<vmem>>, %arg3: memref<1x32xf32, #tpu.memory_space<vmem>>, %arg4: memref<16x32xf32, #tpu.memory_space<vmem>>) attributes {dimension_semantics = [#tpu.dimension_semantics<parallel>], iteration_bounds = array<i64: 1>, scalar_prefetch = 0 : i64, scratch_operands = 0 : i64, tpu.core_type = #tpu.core_type<tc>, window_params = [{transform_indices = @transform_0, window_bounds = array<i64: 16, 32>}, {pipeline_mode = #tpu.pipeline_mode<synchronous>, transform_indices = @transform_1, window_bounds = array<i64: 1, 32>}, {pipeline_mode = #tpu.pipeline_mode<synchronous>, transform_indices = @transform_2, window_bounds = array<i64: 1, 32>}, {transform_indices = @transform_3, window_bounds = array<i64: 16, 32>}]} {
    %c0 = arith.constant 0 : index
    %c0_0 = arith.constant 0 : index
    %0 = vector.load %arg1[%c0, %c0_0] : memref<16x32xf32, #tpu.memory_space<vmem>>, vector<16x32xf32>
    %c0_1 = arith.constant 0 : index
    %c0_2 = arith.constant 0 : index
    %1 = vector.load %arg2[%c0_1, %c0_2] : memref<1x32xf32, #tpu.memory_space<vmem>>, vector<1x32xf32>
    %c0_3 = arith.constant 0 : index
    %c0_4 = arith.constant 0 : index
    %2 = vector.load %arg3[%c0_3, %c0_4] : memref<1x32xf32, #tpu.memory_space<vmem>>, vector<1x32xf32>
    %cst = arith.constant dense<0.000000e+00> : vector<16xf32>
    %3 = vector.multi_reduction <add>, %0, %cst [1] : vector<16x32xf32> to vector<16xf32>
    %4 = vector.shape_cast %3 : vector<16xf32> to vector<16x1xf32>
    %cst_5 = arith.constant 3.200000e+01 : f32
    %5 = vector.broadcast %cst_5 : f32 to vector<16x1xf32>
    %6 = arith.divf %4, %5 : vector<16x1xf32>
    %7 = vector.broadcast %6 : vector<16x1xf32> to vector<16x32xf32>
    %8 = arith.subf %0, %7 : vector<16x32xf32>
    %9 = arith.mulf %8, %8 : vector<16x32xf32>
    %cst_6 = arith.constant dense<0.000000e+00> : vector<16xf32>
    %10 = vector.multi_reduction <add>, %9, %cst_6 [1] : vector<16x32xf32> to vector<16xf32>
    %11 = vector.shape_cast %10 : vector<16xf32> to vector<16x1xf32>
    %cst_7 = arith.constant 3.200000e+01 : f32
    %12 = vector.broadcast %cst_7 : f32 to vector<16x1xf32>
    %13 = arith.divf %11, %12 : vector<16x1xf32>
    %14 = vector.broadcast %6 : vector<16x1xf32> to vector<16x32xf32>
    %15 = arith.subf %0, %14 : vector<16x32xf32>
    %cst_8 = arith.constant 9.99999974E-6 : f32
    %16 = vector.broadcast %cst_8 : f32 to vector<16x1xf32>
    %17 = arith.addf %13, %16 : vector<16x1xf32>
    %18 = math.rsqrt %17 : vector<16x1xf32>
    %19 = vector.broadcast %18 : vector<16x1xf32> to vector<16x32xf32>
    %20 = arith.mulf %15, %19 : vector<16x32xf32>
    %21 = vector.broadcast %1 : vector<1x32xf32> to vector<16x32xf32>
    %22 = arith.mulf %20, %21 : vector<16x32xf32>
    %23 = vector.broadcast %2 : vector<1x32xf32> to vector<16x32xf32>
    %24 = arith.addf %22, %23 : vector<16x32xf32>
    %c0_9 = arith.constant 0 : index
    %c0_10 = arith.constant 0 : index
    %25 = vector.load %arg4[%c0_9, %c0_10] : memref<16x32xf32, #tpu.memory_space<vmem>>, vector<16x32xf32>
    tpu.vector_store %arg4[%c0_9, %c0_10], %24 {strides = array<i32>} : memref<16x32xf32, #tpu.memory_space<vmem>>, vector<16x32xf32>,
    return
  }
  func.func @transform_0(%arg0: i32) -> (i32, i32) {
    %c0_i32 = arith.constant 0 : i32
    %c0_i32_0 = arith.constant 0 : i32
    return %arg0, %c0_i32 : i32, i32
  }
  func.func @transform_1(%arg0: i32) -> (i32, i32) {
    %c0_i32 = arith.constant 0 : i32
    %c0_i32_0 = arith.constant 0 : i32
    %c0_i32_1 = arith.constant 0 : i32
    return %c0_i32, %c0_i32_0 : i32, i32
  }
  func.func @transform_2(%arg0: i32) -> (i32, i32) {
    %c0_i32 = arith.constant 0 : i32
    %c0_i32_0 = arith.constant 0 : i32
    %c0_i32_1 = arith.constant 0 : i32
    return %c0_i32, %c0_i32_0 : i32, i32
  }
  func.func @transform_3(%arg0: i32) -> (i32, i32) {
    %c0_i32 = arith.constant 0 : i32
    %c0_i32_0 = arith.constant 0 : i32
    return %arg0, %c0_i32 : i32, i32
  }
}

</mosaic_0001>

<llo_original>
// kernel: tpu_custom_call.1
$region0: #{tpu_custom_call.1}
  #allocation0 [shape = 'u32[]', space=smem, size = 0x4, offset = 0x4, fixed_abs, tag = 'smem constant byte address 0x4 - core index']
  #allocation1 [shape = 'u32[144,128]{1,0:T(1,128)}', space=vmem, size = 0x12000, scoped, tag = 'internal scratch']
  %s0 = inlined_call_operand.hbm [shape: f32[16,32], index: 0, kind: input, shape index: {}]
  %s1 = inlined_call_operand.vmem [shape: f32[1,32], index: 1, kind: input, shape index: {}]
  %s2 = inlined_call_operand.vmem [shape: f32[1,32], index: 2, kind: input, shape index: {}]
  %s3 = inlined_call_operand.hbm [shape: f32[16,32], index: 3, kind: output, shape index: {}]
  %s4 = sld [smem:[#allocation0]]
  $region26: #{tpu_custom_call.1} parent=0
    _
  %s6 = ssub.s32 1, %s4
  %s7 = scalar_select 0, %s6, %s4
  $region1: #{tpu_custom_call.1} parent=0
    #allocation2 [shape = 'u8[8192]{0}', space=vmem, size = 0x2000, scoped, tag = 'input window, operand 0, single buffered']
    #allocation3 [shape = 's32[1]{0}', space=sflag, size = 0x4, scoped, tag = 'scoped memory for tpu_custom_call.1']
    #allocation4 [shape = 's32[1]{0}', space=sflag, size = 0x4, scoped, tag = 'scoped memory for tpu_custom_call.1']
    #allocation5 [shape = 'u8[8192]{0}', space=vmem, size = 0x2000, scoped, tag = 'output window, operand 0, single buffered']
    %8 = vsyncpa [#allocation3], 0
    %9 = vsyncpa [#allocation4], 0
    // Predicated region
    $region2: #{tpu_custom_call.1} parent=1 // pred_check
      _
    $region3: #{tpu_custom_call.1} parent=1 // pred_check_branch
      %11 = sbr.rel (0) target = $region5
    $region4: #{tpu_custom_call.1} parent=1 // pred_region
      %s13 = ssub.s32 256, 256
      %14 = vsyncadd [#allocation3], %s13
      %s15 = sshll.u32 [#allocation2], 4
      %s16 = int_to_ptr.vmem [resolvable:$true] %s15
      %21 = dma.hbm_to_vmem [thread:$0]  %s0, 256, %s16, [#allocation3], 128, 128, 8
    $region5: #{tpu_custom_call.1} parent=1 // pred_fallthru
      _
    // Predicated region
    $region6: #{tpu_custom_call.1} parent=1 // pred_check
      _
    $region7: #{tpu_custom_call.1} parent=1 // pred_check_branch
      %23 = sbr.rel (0) target = $region9
    $region8: #{tpu_custom_call.1} parent=1 // pred_region
      _
    $region9: #{tpu_custom_call.1} parent=1 // pred_fallthru
      _
    // Predicated region
    $region10: #{tpu_custom_call.1} parent=1 // pred_check
      _
    $region11: #{tpu_custom_call.1} parent=1 // pred_check_branch
      %25 = sbr.rel (0) target = $region13
    $region12: #{tpu_custom_call.1} parent=1 // pred_region
      _
    $region13: #{tpu_custom_call.1} parent=1 // pred_fallthru
      _
    // Predicated region
    $region14: #{tpu_custom_call.1} parent=1 // pred_check
      _
    $region15: #{tpu_custom_call.1} parent=1 // pred_check_branch
      %27 = sbr.rel (0) target = $region17
    $region16: #{tpu_custom_call.1} parent=1 // pred_region
      %28 = dma.done [#allocation3], 256
    $region17: #{tpu_custom_call.1} parent=1 // pred_fallthru
      _
    %v29 = vld [vmem:[#allocation2] sm:$0xff]
    %v30 = vld [vmem:[#allocation2 + $0x8] sm:$0xff]
    %v31 = vld [vmem:[%s1] sm:$0x1]
    %v32 = vld [vmem:[%s2] sm:$0x1]
    %vm33 = vcmask 261120
    %v34 = vsel %vm33, %v29, 0.0
    %35 = vadd.xlane.f32.xlu0 %v34
    %v36 = vpop.xlane.xlu0 %35
    %v37 = vsel %vm33, %v30, 0.0
    %38 = vadd.xlane.f32.xlu0 %v37
    %v39 = vpop.xlane.xlu0 %38
    %v40 = vrcp.pop 32.0
    %v41 = vmul.f32 %v36, %v40
    %v42 = vmul.f32 %v39, %v40
    %v43 = vsub.f32 %v29, %v41
    %v44 = vsub.f32 %v30, %v42
    %v45 = vmul.f32 %v43, %v43
    %v46 = vmul.f32 %v44, %v44
    %v47 = vsel %vm33, %v45, 0.0
    %48 = vadd.xlane.f32.xlu0 %v47
    %v49 = vpop.xlane.xlu0 %48
    %v50 = vsel %vm33, %v46, 0.0
    %51 = vadd.xlane.f32.xlu0 %v50
    %v52 = vpop.xlane.xlu0 %51
    %v53 = vmul.f32 %v49, %v40
    %v54 = vmul.f32 %v52, %v40
    %v55 = vadd.f32 %v53, 1e-05
    %v56 = vadd.f32 %v54, 1e-05
    %v57 = vrsqrt.pop %v55
    %v58 = vrsqrt.pop %v56
    %v59 = vmul.f32 %v43, %v57
    %v60 = vmul.f32 %v44, %v58
    %v62 = vlaneseq
    %v63 = vshrl.u32 %v62, 7
    %v64 = vsub.s32 0, %v63
    %v65 = vrot.slane %v31, %v64
    %v67 = vmul.f32 %v59, %v65
    %v68 = vmul.f32 %v60, %v65
    %v70 = vlaneseq
    %v71 = vshrl.u32 %v70, 7
    %v72 = vsub.s32 0, %v71
    %v73 = vrot.slane %v32, %v72
    %v75 = vadd.f32 %v67, %v73
    %v76 = vadd.f32 %v68, %v73
    %77 = vst.msk [vmem:[#allocation5] sm:$0xff] %vm33, %v75
    %78 = vst.msk [vmem:[#allocation5 + $0x8] sm:$0xff] %vm33, %v76
    // Predicated region
    $region18: #{tpu_custom_call.1} parent=1 // pred_check
      _
    $region19: #{tpu_custom_call.1} parent=1 // pred_check_branch
      %80 = sbr.rel (0) target = $region21
    $region20: #{tpu_custom_call.1} parent=1 // pred_region
      %s82 = ssub.s32 256, 256
      %83 = vsyncadd [#allocation4], %s82
      %s84 = sshll.u32 [#allocation5], 4
      %s85 = int_to_ptr.vmem [resolvable:$true] %s84
      %90 = dma.vmem_to_hbm [thread:$0]  %s85, 256, %s3, [#allocation4], 128, 128, 8
    $region21: #{tpu_custom_call.1} parent=1 // pred_fallthru
      _
    // Predicated region
    $region22: #{tpu_custom_call.1} parent=1 // pred_check
      _
    $region23: #{tpu_custom_call.1} parent=1 // pred_check_branch
      %92 = sbr.rel (0) target = $region25
    $region24: #{tpu_custom_call.1} parent=1 // pred_region
      %93 = dma.done [#allocation4], 256
    $region25: #{tpu_custom_call.1} parent=1 // pred_fallthru
      _
    %94 = vsyncpa [#allocation3], 1
    %95 = vsyncpa [#allocation4], 1

</llo_original>
